<compile_context>
chip_gen: v6e
topology: v6e:2x2x1
jax: 0.10.0
libtpu: 0.0.40
codegen_flags: <defaults>
</compile_context>

<pallas_src>
import math

import jax
import jax.numpy as jnp
from jax.experimental import pallas as pl
from jax.experimental.pallas import tpu as pltpu


# ----------------------------------------------------------------------------- kernel
def _critic_kernel(x_ref, g_ref, gb_ref, wv_ref, w1_ref, b1_ref, w2_ref, b2_ref,
                   out_ref, ex_ref):
    f32, bf16 = jnp.float32, jnp.bfloat16
    ne = gb_ref.shape[-1]                                   # N * E (static)

    # per-agent input embedding, packed block-diagonally: e_flat = [s|a]_flat @ G + g_b
    e = (jnp.dot(x_ref[...], g_ref[...], preferred_element_type=f32)
         + gb_ref[...])                                     # (TB, NE) f32

    # Attention is a no-op (softmax rows sum to 1), so x == relu(V_share(e)).
    # Q/K projections + softmax removed as dead compute.
    e_b = e.astype(bf16)
    x = jnp.maximum(jnp.dot(e_b, wv_ref[...], preferred_element_type=f32), 0.0)

    # concat([e, x]) packed into one lane-dense bf16 slab -> single K=2*NE matmul
    ex_ref[:, :ne] = e_b
    ex_ref[:, ne:] = x.astype(bf16)
    h = jnp.maximum(
        jnp.dot(ex_ref[...], w1_ref[...], preferred_element_type=f32)
        + b1_ref[...], 0.0)                                 # (TB, NE) f32

    # final per-agent head, output padded to 128 lanes (zeros beyond column N)
    out_ref[...] = (jnp.dot(h.astype(bf16), w2_ref[...], preferred_element_type=f32)
                    + b2_ref[...])                          # (TB, NO)


# ----------------------------------------------------------------------------- packing
def _round_up(x, m):
    return ((x + m - 1) // m) * m


def _block_diag(blocks):
    """(N, r, c) -> (N*r, N*c) block-diagonal."""
    n, r, c = blocks.shape
    eye = jnp.eye(n, dtype=blocks.dtype)
    return jnp.einsum('nrc,nm->nrmc', blocks, eye).reshape(n * r, n * c)


def pack_params(p):
    """One-time weight packing (hoisted out of the per-call forward path).

    Weights are stored bf16 (MXU operands); biases stay f32 (VPU adds).
    TODO(synk): block-diag packing costs O((N*E)^2) bytes/FLOPs; if N*E grows well
                past 128/256, switch to per-agent batched matmuls instead.
    """
    bf16 = jnp.bfloat16
    g_w = p["g_w"]
    N, _, E = g_w.shape
    NE = N * E
    NO = max(128, _round_up(N, 128))                 # lane-dense padded output width

    wv_rep = jnp.broadcast_to(p["Wv"].T, (N, E, E))  # shared V projection per agent
    W1e = _block_diag(p["gx_w1"][:, :E, :])          # multiplies the e-part of [e|x]
    W1x = _block_diag(p["gx_w1"][:, E:, :])          # multiplies the x-part of [e|x]
    W2 = _block_diag(p["gx_w2"])                     # (NE, N)
    W2_pad = jnp.zeros((NE, NO), jnp.float32).at[:, :N].set(W2)
    b2_pad = jnp.zeros((1, NO), jnp.float32).at[:, :N].set(p["gx_b2"].reshape(1, N))

    return dict(
        G=_block_diag(g_w).astype(bf16),             # (N*(S+A), NE)
        gb=p["g_b"].reshape(1, NE).astype(jnp.float32),
        Wv=_block_diag(wv_rep).astype(bf16),         # (NE, NE)
        W1=jnp.concatenate([W1e, W1x], axis=0).astype(bf16),   # (2*NE, NE)
        b1=p["gx_b1"].reshape(1, NE).astype(jnp.float32),
        W2=W2_pad.astype(bf16),                      # (NE, NO)
        b2=b2_pad,                                   # (1, NO) f32
    )


# ----------------------------------------------------------------------------- wrapper
def critic_forward(state, action, packed, *, batch_tile=1024):
    B, N, S = state.shape
    A = action.shape[-1]
    NE = packed["gb"].shape[-1]
    NO = packed["W2"].shape[-1]
    IN = N * (S + A)

    # Balanced batch tiling: roughly-equal tiles (<= batch_tile), each a multiple
    # of 8 sublanes; force >=2 grid steps when possible so both v7x cores work.
    n_tiles = max(1, -(-B // batch_tile))            # cdiv
    if n_tiles == 1 and B > 8:
        n_tiles = 2
    TB = _round_up(-(-B // n_tiles), 8)
    Bp = _round_up(B, TB)

    # single (TB, N*(S+A)) bf16 input stream per step
    x_in = jnp.concatenate([state, action], axis=-1).reshape(B, IN).astype(jnp.bfloat16)
    if Bp != B:
        x_in = jnp.pad(x_in, ((0, Bp - B), (0, 0)))

    const = lambda b: (0, 0)
    out = pl.pallas_call(
        _critic_kernel,
        out_shape=jax.ShapeDtypeStruct((Bp, NO), jnp.float32),
        grid=(Bp // TB,),
        in_specs=[
            pl.BlockSpec((TB, IN), lambda b: (b, 0)),    # [state|action] per agent, flat
            pl.BlockSpec((IN, NE), const),               # block-diag input projection
            pl.BlockSpec((1, NE), const),                # g_bias packed
            pl.BlockSpec((NE, NE), const),               # block-diag Wv.T
            pl.BlockSpec((2 * NE, NE), const),           # stacked block-diag gx_w1
            pl.BlockSpec((1, NE), const),                # gx_bias_1 packed
            pl.BlockSpec((NE, NO), const),               # block-diag gx_w2, lane-padded
            pl.BlockSpec((1, NO), const),                # gx_bias_2, lane-padded
        ],
        out_specs=pl.BlockSpec((TB, NO), lambda b: (b, 0)),
        scratch_shapes=[pltpu.VMEM((TB, 2 * NE), jnp.bfloat16)],
        compiler_params=pltpu.CompilerParams(
            dimension_semantics=("parallel",),
            vmem_limit_bytes=32 * 1024 * 1024),
    )(x_in, packed["G"], packed["gb"], packed["Wv"], packed["W1"],
      packed["b1"], packed["W2"], packed["b2"])

    return out[:B, :N].reshape(B, N, 1)


# ----------------------------------------------------------------------------- reference
def critic_ref(state, action, p, num_heads):
    """Pure-JAX reference mirroring the PyTorch forward exactly (incl. softmax)."""
    B, N, _ = state.shape
    E = p["g_b"].shape[-1]
    H, Hd = num_heads, E // num_heads
    hp = jax.lax.Precision.HIGHEST
    x_in = jnp.concatenate([state, action], axis=-1)
    e = jnp.einsum('bni,nio->bno', x_in, p["g_w"], precision=hp) + p["g_b"]

    def split_heads(t):
        return t.reshape(B, N, H, Hd).transpose(0, 2, 1, 3)

    q = split_heads(jnp.einsum('bni,oi->bno', e, p["Wq"], precision=hp))
    k = split_heads(jnp.einsum('bni,oi->bno', e, p["Wk"], precision=hp))
    v = split_heads(jnp.einsum('bni,oi->bno', e, p["Wv"], precision=hp))
    attn = jnp.einsum('bhqd,bhkd->bhqk', q, k, precision=hp) / math.sqrt(Hd)
    score = jax.nn.softmax(attn, axis=-1)
    v = jax.nn.relu(v)
    x = jnp.einsum('bhnm,bhnd->bhnd', score, v, precision=hp)
    x = x.transpose(0, 2, 1, 3).reshape(B, N, E)
    ex = jnp.concatenate([e, x], axis=-1)
    fc1 = jax.nn.relu(jnp.einsum('bni,nio->bno', ex, p["gx_w1"], precision=hp) + p["gx_b1"])
    return jnp.einsum('bni,nio->bno', fc1, p["gx_w2"], precision=hp) + p["gx_b2"]


# ----------------------------------------------------------------------------- params
def init_params(key, num_agents, state_dim, action_dim, embed_dim):
    input_dim = state_dim + action_dim
    ks = jax.random.split(key, 9)

    def u(k, shape, fan_in, scale=1.0):
        b = math.sqrt(6.0 / fan_in) * scale
        return jax.random.uniform(k, shape, jnp.float32, -b, b)

    return dict(
        g_w=u(ks[0], (num_agents, input_dim, embed_dim), input_dim),
        g_b=u(ks[1], (num_agents, embed_dim), embed_dim, 0.1),
        Wq=u(ks[2], (embed_dim, embed_dim), embed_dim),      # only used by reference
        Wk=u(ks[3], (embed_dim, embed_dim), embed_dim),      # only used by reference
        Wv=u(ks[4], (embed_dim, embed_dim), embed_dim),
        gx_w1=u(ks[5], (num_agents, 2 * embed_dim, embed_dim), 2 * embed_dim),
        gx_b1=u(ks[6], (num_agents, embed_dim), embed_dim, 0.1),
        gx_w2=u(ks[7], (num_agents, embed_dim, 1), embed_dim),
        gx_b2=u(ks[8], (num_agents, 1), embed_dim, 0.1),
        # g_o_weight / g_o_bias only used on the baseline_agent path (not implemented).
    )


if __name__ == "__main__":
    B, N, S, A, E, H = 2, 4, 8, 4, 32, 4
    key = jax.random.PRNGKey(0)
    kp, ks, ka = jax.random.split(key, 3)
    params = init_params(kp, N, S, A, E)
    state = jax.random.normal(ks, (B, N, S), jnp.float32)
    action = jax.random.normal(ka, (B, N, A), jnp.float32)

    packed = jax.tree.map(jax.block_until_ready, pack_params(params))  # one-time packing

    out = critic_forward(state, action, packed)
    out = jax.block_until_ready(out)
    assert out.shape == (B, N, 1), out.shape

    ref = critic_ref(state, action, params, H)
    # bf16 MXU operands vs. a HIGHEST-precision f32 reference -> 2e-2 tolerance.
    if not jnp.allclose(out, ref, rtol=2e-2, atol=2e-2):
        raise AssertionError(f"mismatch: max abs diff {jnp.max(jnp.abs(out - ref))}")
    print("KERNEL_OK")
</pallas_src>

<mosaic_0001>
module attributes {stable_mosaic.version = 11 : i64} {
  func.func @_critic_kernel(%arg0: i32, %arg1: memref<8x48xbf16, #tpu.memory_space<vmem>>, %arg2: memref<48x128xbf16, #tpu.memory_space<vmem>>, %arg3: memref<1x128xf32, #tpu.memory_space<vmem>>, %arg4: memref<128x128xbf16, #tpu.memory_space<vmem>>, %arg5: memref<256x128xbf16, #tpu.memory_space<vmem>>, %arg6: memref<1x128xf32, #tpu.memory_space<vmem>>, %arg7: memref<128x128xbf16, #tpu.memory_space<vmem>>, %arg8: memref<1x128xf32, #tpu.memory_space<vmem>>, %arg9: memref<8x128xf32, #tpu.memory_space<vmem>>, %arg10: memref<8x256xbf16, #tpu.memory_space<vmem>>) attributes {dimension_semantics = [#tpu.dimension_semantics<parallel>], iteration_bounds = array<i64: 1>, scalar_prefetch = 0 : i64, scratch_operands = 1 : i64, tpu.core_type = #tpu.core_type<tc>, window_params = [{transform_indices = @transform_0, window_bounds = array<i64: 8, 48>}, {pipeline_mode = #tpu.pipeline_mode<synchronous>, transform_indices = @transform_1, window_bounds = array<i64: 48, 128>}, {pipeline_mode = #tpu.pipeline_mode<synchronous>, transform_indices = @transform_2, window_bounds = array<i64: 1, 128>}, {pipeline_mode = #tpu.pipeline_mode<synchronous>, transform_indices = @transform_3, window_bounds = array<i64: 128, 128>}, {pipeline_mode = #tpu.pipeline_mode<synchronous>, transform_indices = @transform_4, window_bounds = array<i64: 256, 128>}, {pipeline_mode = #tpu.pipeline_mode<synchronous>, transform_indices = @transform_5, window_bounds = array<i64: 1, 128>}, {pipeline_mode = #tpu.pipeline_mode<synchronous>, transform_indices = @transform_6, window_bounds = array<i64: 128, 128>}, {pipeline_mode = #tpu.pipeline_mode<synchronous>, transform_indices = @transform_7, window_bounds = array<i64: 1, 128>}, {transform_indices = @transform_8, window_bounds = array<i64: 8, 128>}]} {
    %c0 = arith.constant 0 : index
    %c0_0 = arith.constant 0 : index
    %0 = vector.load %arg1[%c0, %c0_0] : memref<8x48xbf16, #tpu.memory_space<vmem>>, vector<8x48xbf16>
    %c0_1 = arith.constant 0 : index
    %c0_2 = arith.constant 0 : index
    %1 = vector.load %arg2[%c0_1, %c0_2] : memref<48x128xbf16, #tpu.memory_space<vmem>>, vector<48x128xbf16>
    %cst = arith.constant dense<0.000000e+00> : vector<8x128xf32>
    %2 = tpu.matmul %0, %1, %cst {dimension_numbers = #tpu.dot_dimension_numbers<[1], [0], [0], [1], [0, 0, 1, 1], [], []>} : vector<8x48xbf16>, vector<48x128xbf16>, vector<8x128xf32> -> vector<8x128xf32>
    %c0_3 = arith.constant 0 : index
    %c0_4 = arith.constant 0 : index
    %3 = vector.load %arg3[%c0_3, %c0_4] : memref<1x128xf32, #tpu.memory_space<vmem>>, vector<1x128xf32>
    %4 = vector.broadcast %3 : vector<1x128xf32> to vector<8x128xf32>
    %5 = arith.addf %2, %4 : vector<8x128xf32>
    %6 = arith.truncf %5 : vector<8x128xf32> to vector<8x128xbf16>
    %c0_5 = arith.constant 0 : index
    %c0_6 = arith.constant 0 : index
    %7 = vector.load %arg4[%c0_5, %c0_6] : memref<128x128xbf16, #tpu.memory_space<vmem>>, vector<128x128xbf16>
    %cst_7 = arith.constant dense<0.000000e+00> : vector<8x128xf32>
    %8 = tpu.matmul %6, %7, %cst_7 {dimension_numbers = #tpu.dot_dimension_numbers<[1], [0], [0], [1], [0, 0, 1, 1], [], []>} : vector<8x128xbf16>, vector<128x128xbf16>, vector<8x128xf32> -> vector<8x128xf32>
    %cst_8 = arith.constant 0.000000e+00 : f32
    %9 = vector.broadcast %cst_8 : f32 to vector<8x128xf32>
    %10 = arith.maximumf %8, %9 : vector<8x128xf32>
    %c0_9 = arith.constant 0 : index
    %c0_10 = arith.constant 0 : index
    %11 = vector.load %arg10[%c0_9, %c0_10] : memref<8x256xbf16, #tpu.memory_space<vmem>>, vector<8x128xbf16>
    tpu.vector_store %arg10[%c0_9, %c0_10], %6 {strides = array<i32>} : memref<8x256xbf16, #tpu.memory_space<vmem>>, vector<8x128xbf16>,
    %12 = arith.truncf %10 : vector<8x128xf32> to vector<8x128xbf16>
    %c0_11 = arith.constant 0 : index
    %c128 = arith.constant 128 : index
    %13 = vector.load %arg10[%c0_11, %c128] : memref<8x256xbf16, #tpu.memory_space<vmem>>, vector<8x128xbf16>
    tpu.vector_store %arg10[%c0_11, %c128], %12 {strides = array<i32>} : memref<8x256xbf16, #tpu.memory_space<vmem>>, vector<8x128xbf16>,
    %c0_12 = arith.constant 0 : index
    %c0_13 = arith.constant 0 : index
    %14 = vector.load %arg10[%c0_12, %c0_13] : memref<8x256xbf16, #tpu.memory_space<vmem>>, vector<8x256xbf16>
    %c0_14 = arith.constant 0 : index
    %c0_15 = arith.constant 0 : index
    %15 = vector.load %arg5[%c0_14, %c0_15] : memref<256x128xbf16, #tpu.memory_space<vmem>>, vector<256x128xbf16>
    %cst_16 = arith.constant dense<0.000000e+00> : vector<8x128xf32>
    %16 = tpu.matmul %14, %15, %cst_16 {dimension_numbers = #tpu.dot_dimension_numbers<[1], [0], [0], [1], [0, 0, 1, 1], [], []>} : vector<8x256xbf16>, vector<256x128xbf16>, vector<8x128xf32> -> vector<8x128xf32>
    %c0_17 = arith.constant 0 : index
    %c0_18 = arith.constant 0 : index
    %17 = vector.load %arg6[%c0_17, %c0_18] : memref<1x128xf32, #tpu.memory_space<vmem>>, vector<1x128xf32>
    %18 = vector.broadcast %17 : vector<1x128xf32> to vector<8x128xf32>
    %19 = arith.addf %16, %18 : vector<8x128xf32>
    %cst_19 = arith.constant 0.000000e+00 : f32
    %20 = vector.broadcast %cst_19 : f32 to vector<8x128xf32>
    %21 = arith.maximumf %19, %20 : vector<8x128xf32>
    %22 = arith.truncf %21 : vector<8x128xf32> to vector<8x128xbf16>
    %c0_20 = arith.constant 0 : index
    %c0_21 = arith.constant 0 : index
    %23 = vector.load %arg7[%c0_20, %c0_21] : memref<128x128xbf16, #tpu.memory_space<vmem>>, vector<128x128xbf16>
    %cst_22 = arith.constant dense<0.000000e+00> : vector<8x128xf32>
    %24 = tpu.matmul %22, %23, %cst_22 {dimension_numbers = #tpu.dot_dimension_numbers<[1], [0], [0], [1], [0, 0, 1, 1], [], []>} : vector<8x128xbf16>, vector<128x128xbf16>, vector<8x128xf32> -> vector<8x128xf32>
    %c0_23 = arith.constant 0 : index
    %c0_24 = arith.constant 0 : index
    %25 = vector.load %arg8[%c0_23, %c0_24] : memref<1x128xf32, #tpu.memory_space<vmem>>, vector<1x128xf32>
    %26 = vector.broadcast %25 : vector<1x128xf32> to vector<8x128xf32>
    %27 = arith.addf %24, %26 : vector<8x128xf32>
    %c0_25 = arith.constant 0 : index
    %c0_26 = arith.constant 0 : index
    %28 = vector.load %arg9[%c0_25, %c0_26] : memref<8x128xf32, #tpu.memory_space<vmem>>, vector<8x128xf32>
    tpu.vector_store %arg9[%c0_25, %c0_26], %27 {strides = array<i32>} : memref<8x128xf32, #tpu.memory_space<vmem>>, vector<8x128xf32>,
    return
  }
  func.func @transform_0(%arg0: i32) -> (i32, i32) {
    %c0_i32 = arith.constant 0 : i32
    %c0_i32_0 = arith.constant 0 : i32
    return %arg0, %c0_i32 : i32, i32
  }
  func.func @transform_1(%arg0: i32) -> (i32, i32) {
    %c0_i32 = arith.constant 0 : i32
    %c0_i32_0 = arith.constant 0 : i32
    %c0_i32_1 = arith.constant 0 : i32
    return %c0_i32, %c0_i32_0 : i32, i32
  }
  func.func @transform_2(%arg0: i32) -> (i32, i32) {
    %c0_i32 = arith.constant 0 : i32
    %c0_i32_0 = arith.constant 0 : i32
    %c0_i32_1 = arith.constant 0 : i32
    return %c0_i32, %c0_i32_0 : i32, i32
  }
  func.func @transform_3(%arg0: i32) -> (i32, i32) {
    %c0_i32 = arith.constant 0 : i32
    %c0_i32_0 = arith.constant 0 : i32
    %c0_i32_1 = arith.constant 0 : i32
    return %c0_i32, %c0_i32_0 : i32, i32
  }
  func.func @transform_4(%arg0: i32) -> (i32, i32) {
    %c0_i32 = arith.constant 0 : i32
    %c0_i32_0 = arith.constant 0 : i32
    %c0_i32_1 = arith.constant 0 : i32
    return %c0_i32, %c0_i32_0 : i32, i32
  }
  func.func @transform_5(%arg0: i32) -> (i32, i32) {
    %c0_i32 = arith.constant 0 : i32
    %c0_i32_0 = arith.constant 0 : i32
    %c0_i32_1 = arith.constant 0 : i32
    return %c0_i32, %c0_i32_0 : i32, i32
  }
  func.func @transform_6(%arg0: i32) -> (i32, i32) {
    %c0_i32 = arith.constant 0 : i32
    %c0_i32_0 = arith.constant 0 : i32
    %c0_i32_1 = arith.constant 0 : i32
    return %c0_i32, %c0_i32_0 : i32, i32
  }
  func.func @transform_7(%arg0: i32) -> (i32, i32) {
    %c0_i32 = arith.constant 0 : i32
    %c0_i32_0 = arith.constant 0 : i32
    %c0_i32_1 = arith.constant 0 : i32
    return %c0_i32, %c0_i32_0 : i32, i32
  }
  func.func @transform_8(%arg0: i32) -> (i32, i32) {
    %c0_i32 = arith.constant 0 : i32
    %c0_i32_0 = arith.constant 0 : i32
    return %arg0, %c0_i32 : i32, i32
  }
}

</mosaic_0001>

<llo_original>
// kernel: tpu_custom_call.1
$region0: #{tpu_custom_call.1}
  #allocation0 [shape = 'u32[]', space=smem, size = 0x4, offset = 0x4, fixed_abs, tag = 'smem constant byte address 0x4 - core index']
  #allocation1 [shape = 'u32[144,128]{1,0:T(1,128)}', space=vmem, size = 0x12000, scoped, tag = 'internal scratch']
  #allocation2 [shape = 'bf16[8,256]{1,0:T(8,128)(2,1)}', space=vmem, size = 0x1000, scoped, tag = 'scratch operand']
  %s0 = inlined_call_operand.hbm [shape: bf16[8,48], index: 0, kind: input, shape index: {}]
  %s1 = inlined_call_operand.hbm [shape: bf16[48,128], index: 1, kind: input, shape index: {}]
  %s2 = inlined_call_operand.vmem [shape: f32[1,128], index: 2, kind: input, shape index: {}]
  %s3 = inlined_call_operand.hbm [shape: bf16[128,128], index: 3, kind: input, shape index: {}]
  %s4 = inlined_call_operand.hbm [shape: bf16[256,128], index: 4, kind: input, shape index: {}]
  %s5 = inlined_call_operand.vmem [shape: f32[1,128], index: 5, kind: input, shape index: {}]
  %s6 = inlined_call_operand.hbm [shape: bf16[128,128], index: 6, kind: input, shape index: {}]
  %s7 = inlined_call_operand.vmem [shape: f32[1,128], index: 7, kind: input, shape index: {}]
  %s8 = inlined_call_operand.hbm [shape: f32[8,128], index: 8, kind: output, shape index: {}]
  %s9 = sld [smem:[#allocation0]]
  $region62: #{tpu_custom_call.1} parent=0
    _
  %s11 = ssub.s32 1, %s9
  %s12 = scalar_select 0, %s11, %s9
  $region1: #{tpu_custom_call.1} parent=0
    #allocation3 [shape = 'u8[2048]{0}', space=vmem, size = 0x800, scoped, tag = 'input window, operand 0, single buffered']
    #allocation4 [shape = 's32[1]{0}', space=sflag, size = 0x4, scoped, tag = 'scoped memory for tpu_custom_call.1']
    #allocation5 [shape = 's32[1]{0}', space=sflag, size = 0x4, scoped, tag = 'scoped memory for tpu_custom_call.1']
    #allocation6 [shape = 'u8[12288]{0}', space=vmem, size = 0x3000, scoped, tag = 'input window, operand 1, single buffered']
    #allocation7 [shape = 's32[1]{0}', space=sflag, size = 0x4, scoped, tag = 'scoped memory for tpu_custom_call.1']
    #allocation8 [shape = 'u8[32768]{0}', space=vmem, size = 0x8000, scoped, tag = 'input window, operand 3, single buffered']
    #allocation9 [shape = 'u8[65536]{0}', space=vmem, size = 0x10000, scoped, tag = 'input window, operand 4, single buffered']
    #allocation10 [shape = 's32[1]{0}', space=sflag, size = 0x4, scoped, tag = 'scoped memory for tpu_custom_call.1']
    #allocation11 [shape = 'u8[32768]{0}', space=vmem, size = 0x8000, scoped, tag = 'input window, operand 6, single buffered']
    #allocation12 [shape = 'u8[4096]{0}', space=vmem, size = 0x1000, scoped, tag = 'output window, operand 0, single buffered']
    %13 = vsyncpa [#allocation4], 0
    %14 = vsyncpa [#allocation7], 0
    %15 = vsyncpa [#allocation10], 0
    %16 = vsyncpa [#allocation5], 0
    // Predicated region
    $region2: #{tpu_custom_call.1} parent=1 // pred_check
      _
    $region3: #{tpu_custom_call.1} parent=1 // pred_check_branch
      %18 = sbr.rel (0) target = $region5
    $region4: #{tpu_custom_call.1} parent=1 // pred_region
      %s20 = ssub.s32 64, 64
      %21 = vsyncadd [#allocation4], %s20
      %s23 = sshll.u32 [#allocation3], 4
      %s24 = int_to_ptr.vmem [resolvable:$true] %s23
      %26 = dma.hbm_to_vmem [thread:$0]  %s0, 64, %s24, [#allocation4]
    $region5: #{tpu_custom_call.1} parent=1 // pred_fallthru
      _
    // Predicated region
    $region6: #{tpu_custom_call.1} parent=1 // pred_check
      _
    $region7: #{tpu_custom_call.1} parent=1 // pred_check_branch
      %28 = sbr.rel (0) target = $region9
    $region8: #{tpu_custom_call.1} parent=1 // pred_region
      %s30 = ssub.s32 384, 384
      %31 = vsyncadd [#allocation7], %s30
      %s32 = sshll.u32 [#allocation6], 4
      %s33 = int_to_ptr.vmem [resolvable:$true] %s32
      %38 = dma.hbm_to_vmem [thread:$0]  %s1, 384, %s33, [#allocation7], 64, 64, 4
    $region9: #{tpu_custom_call.1} parent=1 // pred_fallthru
      _
    // Predicated region
    $region10: #{tpu_custom_call.1} parent=1 // pred_check
      _
    $region11: #{tpu_custom_call.1} parent=1 // pred_check_branch
      %40 = sbr.rel (0) target = $region13
    $region12: #{tpu_custom_call.1} parent=1 // pred_region
      _
    $region13: #{tpu_custom_call.1} parent=1 // pred_fallthru
      _
    // Predicated region
    $region14: #{tpu_custom_call.1} parent=1 // pred_check
      _
    $region15: #{tpu_custom_call.1} parent=1 // pred_check_branch
      %42 = sbr.rel (0) target = $region17
    $region16: #{tpu_custom_call.1} parent=1 // pred_region
      %s44 = ssub.s32 1024, 1024
      %45 = vsyncadd [#allocation7], %s44
      %s46 = sshll.u32 [#allocation8], 4
      %s47 = int_to_ptr.vmem [resolvable:$true] %s46
      %52 = dma.hbm_to_vmem [thread:$0]  %s3, 1024, %s47, [#allocation7], 64, 64, 4
    $region17: #{tpu_custom_call.1} parent=1 // pred_fallthru
      _
    // Predicated region
    $region18: #{tpu_custom_call.1} parent=1 // pred_check
      _
    $region19: #{tpu_custom_call.1} parent=1 // pred_check_branch
      %54 = sbr.rel (0) target = $region21
    $region20: #{tpu_custom_call.1} parent=1 // pred_region
      %s56 = ssub.s32 2048, 2048
      %57 = vsyncadd [#allocation10], %s56
      %s58 = sshll.u32 [#allocation9], 4
      %s59 = int_to_ptr.vmem [resolvable:$true] %s58
      %64 = dma.hbm_to_vmem [thread:$0]  %s4, 2048, %s59, [#allocation10], 64, 64, 4
    $region21: #{tpu_custom_call.1} parent=1 // pred_fallthru
      _
    // Predicated region
    $region22: #{tpu_custom_call.1} parent=1 // pred_check
      _
    $region23: #{tpu_custom_call.1} parent=1 // pred_check_branch
      %66 = sbr.rel (0) target = $region25
    $region24: #{tpu_custom_call.1} parent=1 // pred_region
      _
    $region25: #{tpu_custom_call.1} parent=1 // pred_fallthru
      _
    // Predicated region
    $region26: #{tpu_custom_call.1} parent=1 // pred_check
      _
    $region27: #{tpu_custom_call.1} parent=1 // pred_check_branch
      %68 = sbr.rel (0) target = $region29
    $region28: #{tpu_custom_call.1} parent=1 // pred_region
      %s70 = ssub.s32 1024, 1024
      %71 = vsyncadd [#allocation10], %s70
      %s72 = sshll.u32 [#allocation11], 4
      %s73 = int_to_ptr.vmem [resolvable:$true] %s72
      %78 = dma.hbm_to_vmem [thread:$0]  %s6, 1024, %s73, [#allocation10], 64, 64, 4
    $region29: #{tpu_custom_call.1} parent=1 // pred_fallthru
      _
    // Predicated region
    $region30: #{tpu_custom_call.1} parent=1 // pred_check
      _
    $region31: #{tpu_custom_call.1} parent=1 // pred_check_branch
      %80 = sbr.rel (0) target = $region33
    $region32: #{tpu_custom_call.1} parent=1 // pred_region
      _
    $region33: #{tpu_custom_call.1} parent=1 // pred_fallthru
      _
    // Predicated region
    $region34: #{tpu_custom_call.1} parent=1 // pred_check
      _
    $region35: #{tpu_custom_call.1} parent=1 // pred_check_branch
      %82 = sbr.rel (0) target = $region37
    $region36: #{tpu_custom_call.1} parent=1 // pred_region
      %83 = dma.done [#allocation4], 64
    $region37: #{tpu_custom_call.1} parent=1 // pred_fallthru
      _
    // Predicated region
    $region38: #{tpu_custom_call.1} parent=1 // pred_check
      _
    $region39: #{tpu_custom_call.1} parent=1 // pred_check_branch
      %85 = sbr.rel (0) target = $region41
    $region40: #{tpu_custom_call.1} parent=1 // pred_region
      %86 = dma.done [#allocation7], 384
    $region41: #{tpu_custom_call.1} parent=1 // pred_fallthru
      _
    // Predicated region
    $region42: #{tpu_custom_call.1} parent=1 // pred_check
      _
    $region43: #{tpu_custom_call.1} parent=1 // pred_check_branch
      %88 = sbr.rel (0) target = $region45
    $region44: #{tpu_custom_call.1} parent=1 // pred_region
      %89 = dma.done [#allocation7], 1024
    $region45: #{tpu_custom_call.1} parent=1 // pred_fallthru
      _
    // Predicated region
    $region46: #{tpu_custom_call.1} parent=1 // pred_check
      _
    $region47: #{tpu_custom_call.1} parent=1 // pred_check_branch
      %91 = sbr.rel (0) target = $region49
    $region48: #{tpu_custom_call.1} parent=1 // pred_region
      %92 = dma.done [#allocation10], 2048
    $region49: #{tpu_custom_call.1} parent=1 // pred_fallthru
      _
    // Predicated region
    $region50: #{tpu_custom_call.1} parent=1 // pred_check
      _
    $region51: #{tpu_custom_call.1} parent=1 // pred_check_branch
      %94 = sbr.rel (0) target = $region53
    $region52: #{tpu_custom_call.1} parent=1 // pred_region
      %95 = dma.done [#allocation10], 1024
    $region53: #{tpu_custom_call.1} parent=1 // pred_fallthru
      _
    %v97 = vld [vmem:[#allocation3] sm:$0xf]
    %v98 = vld [vmem:[#allocation6] sm:$0xf]
    %v99 = vld [vmem:[#allocation6 + $0x4] sm:$0xf]
    %v100 = vld [vmem:[#allocation6 + $0x8] sm:$0xf]
    %v101 = vld [vmem:[#allocation6 + $0xc] sm:$0xf]
    %v102 = vld [vmem:[#allocation6 + $0x10] sm:$0xf]
    %v103 = vld [vmem:[#allocation6 + $0x14] sm:$0xf]
    %v104 = vld [vmem:[%s2] sm:$0x1]
    %v106 = vlaneseq
    %v107 = vshrl.u32 %v106, 7
    %v108 = vsub.s32 0, %v107
    %v109 = vrot.slane %v104, %v108
    %v117 = vunpack.c.l.b16 %v98
    %v118 = vunpack.c.l.b16 %v99
    %v119 = vunpack.c.l.b16 %v100
    %v120 = vunpack.c.l.b16 %v101
    %v121 = vunpack.c.l.b16 %v102
    %v122 = vunpack.c.l.b16 %v103
    %v123 = vpack.c.b16 %v118, %v117
    %v124 = vpack.c.b16 %v120, %v119
    %v125 = vpack.c.b16 %v122, %v121
    %vm129 = vcmask 392192
    %v131 = vsel %vm129, %v97, 0
    %133 = vmatprep.subr.bf16.mxu0 0
    %134 = vmatpush1.bf16.msra.mxu0 0
    %135 = vmatprep.subr.bf16.mxu0 0
    %136 = vmatpush1.bf16.msra.mxu0 0
    %137 = vmatprep.subr.bf16.mxu0 0
    %138 = vmatpush1.bf16.msra.mxu0 0
    %139 = vmatprep.subr.bf16.mxu0 0
    %140 = vmatpush1.bf16.msra.mxu0 0
    %141 = vmatprep.subr.bf16.mxu0 0
    %142 = vmatpush1.bf16.msra.mxu0 0
    %143 = vmatprep.subr.bf16.mxu0 0
    %144 = vmatpush1.bf16.msra.mxu0 %v125
    %145 = vmatprep.subr.bf16.mxu0 0
    %146 = vmatpush1.bf16.msra.mxu0 %v124
    %147 = vmatprep.subr.bf16.mxu0 0
    %148 = vmatpush1.bf16.msra.mxu0 %v123
    %149 = vmatprep.subr.bf16.mxu0 0
    %150 = vmatpush2.bf16.msra.mxu0 0
    %151 = vmatprep.subr.bf16.mxu0 0
    %152 = vmatpush2.bf16.msra.mxu0 0
    %153 = vmatprep.subr.bf16.mxu0 0
    %154 = vmatpush2.bf16.msra.mxu0 0
    %155 = vmatprep.subr.bf16.mxu0 0
    %156 = vmatpush2.bf16.msra.mxu0 0
    %157 = vmatprep.subr.bf16.mxu0 0
    %158 = vmatpush2.bf16.msra.mxu0 0
    %159 = vmatprep.subr.bf16.mxu0 0
    %160 = vmatpush2.bf16.msra.mxu0 0
    %161 = vmatprep.subr.bf16.mxu0 0
    %162 = vmatpush2.bf16.msra.mxu0 0
    %163 = vmatprep.subr.bf16.mxu0 0
    %164 = vmatpush2.bf16.msra.mxu0 0
    %165 = vmatprep.mubr.bf16.mxu0 0
    %166 = vmatmul.mubr.bf16.gmra.mxu0 %v131
    %v167 = vpop.f32.mrf.mxu0
    %v168 = vadd.f32 %v109, %v167
    %v169 = vpop.f32.mrf.mxu0
    %v170 = vpop.f32.mrf.mxu0
    %v171 = vpop.f32.mrf.mxu0
    %172 = vdwg.mxu0
    %v173 = vpack.c.bf16 %v168, %v168
    %v174 = vld [vmem:[#allocation8] sm:$0xf]
    %v175 = vld [vmem:[#allocation8 + $0x4] sm:$0xf]
    %v176 = vld [vmem:[#allocation8 + $0x8] sm:$0xf]
    %v177 = vld [vmem:[#allocation8 + $0xc] sm:$0xf]
    %v178 = vld [vmem:[#allocation8 + $0x10] sm:$0xf]
    %v179 = vld [vmem:[#allocation8 + $0x14] sm:$0xf]
    %v180 = vld [vmem:[#allocation8 + $0x18] sm:$0xf]
    %v181 = vld [vmem:[#allocation8 + $0x1c] sm:$0xf]
    %v182 = vld [vmem:[#allocation8 + $0x20] sm:$0xf]
    %v183 = vld [vmem:[#allocation8 + $0x24] sm:$0xf]
    %v184 = vld [vmem:[#allocation8 + $0x28] sm:$0xf]
    %v185 = vld [vmem:[#allocation8 + $0x2c] sm:$0xf]
    %v186 = vld [vmem:[#allocation8 + $0x30] sm:$0xf]
    %v187 = vld [vmem:[#allocation8 + $0x34] sm:$0xf]
    %v188 = vld [vmem:[#allocation8 + $0x38] sm:$0xf]
    %v189 = vld [vmem:[#allocation8 + $0x3c] sm:$0xf]
    %v206 = vunpack.c.l.b16 %v174
    %v207 = vunpack.c.l.b16 %v175
    %v208 = vunpack.c.l.b16 %v176
    %v209 = vunpack.c.l.b16 %v177
    %v210 = vunpack.c.l.b16 %v178
    %v211 = vunpack.c.l.b16 %v179
    %v212 = vunpack.c.l.b16 %v180
    %v213 = vunpack.c.l.b16 %v181
    %v214 = vunpack.c.l.b16 %v182
    %v215 = vunpack.c.l.b16 %v183
    %v216 = vunpack.c.l.b16 %v184
    %v217 = vunpack.c.l.b16 %v185
    %v218 = vunpack.c.l.b16 %v186
    %v219 = vunpack.c.l.b16 %v187
    %v220 = vunpack.c.l.b16 %v188
    %v221 = vunpack.c.l.b16 %v189
    %v222 = vpack.c.b16 %v207, %v206
    %v223 = vpack.c.b16 %v209, %v208
    %v224 = vpack.c.b16 %v211, %v210
    %v225 = vpack.c.b16 %v213, %v212
    %v226 = vpack.c.b16 %v215, %v214
    %v227 = vpack.c.b16 %v217, %v216
    %v228 = vpack.c.b16 %v219, %v218
    %v229 = vpack.c.b16 %v221, %v220
    %238 = vmatprep.subr.bf16.mxu0 0
    %239 = vmatpush1.bf16.msra.mxu0 %v229
    %240 = vmatprep.subr.bf16.mxu0 0
    %241 = vmatpush1.bf16.msra.mxu0 %v228
    %242 = vmatprep.subr.bf16.mxu0 0
    %243 = vmatpush1.bf16.msra.mxu0 %v227
    %244 = vmatprep.subr.bf16.mxu0 0
    %245 = vmatpush1.bf16.msra.mxu0 %v226
    %246 = vmatprep.subr.bf16.mxu0 0
    %247 = vmatpush1.bf16.msra.mxu0 %v225
    %248 = vmatprep.subr.bf16.mxu0 0
    %249 = vmatpush1.bf16.msra.mxu0 %v224
    %250 = vmatprep.subr.bf16.mxu0 0
    %251 = vmatpush1.bf16.msra.mxu0 %v223
    %252 = vmatprep.subr.bf16.mxu0 0
    %253 = vmatpush1.bf16.msra.mxu0 %v222
    %254 = vmatprep.subr.bf16.mxu0 0
    %255 = vmatpush2.bf16.msra.mxu0 0
    %256 = vmatprep.subr.bf16.mxu0 0
    %257 = vmatpush2.bf16.msra.mxu0 0
    %258 = vmatprep.subr.bf16.mxu0 0
    %259 = vmatpush2.bf16.msra.mxu0 0
    %260 = vmatprep.subr.bf16.mxu0 0
    %261 = vmatpush2.bf16.msra.mxu0 0
    %262 = vmatprep.subr.bf16.mxu0 0
    %263 = vmatpush2.bf16.msra.mxu0 0
    %264 = vmatprep.subr.bf16.mxu0 0
    %265 = vmatpush2.bf16.msra.mxu0 0
    %266 = vmatprep.subr.bf16.mxu0 0
    %267 = vmatpush2.bf16.msra.mxu0 0
    %268 = vmatprep.subr.bf16.mxu0 0
    %269 = vmatpush2.bf16.msra.mxu0 0
    %270 = vmatprep.mubr.bf16.mxu0 0
    %271 = vmatmul.mubr.bf16.gmra.mxu0 %v173
    %v272 = vpop.f32.mrf.mxu0
    %v273 = vadd.f32 0.0, %v272
    %v274 = vpop.f32.mrf.mxu0
    %v275 = vpop.f32.mrf.mxu0
    %v276 = vpop.f32.mrf.mxu0
    %277 = vdwg.mxu0
    %v278 = vmax.f32 %v273, 0.0
    %279 = vst [vmem:[#allocation2] sm:$0xf] %v173
    %v280 = vpack.c.bf16 %v278, %v278
    %281 = vst [vmem:[#allocation2 + $0x4] sm:$0xf] %v280
    %v282 = vld [vmem:[#allocation2] sm:$0xff]
    %v283 = vld [vmem:[#allocation9] sm:$0xf]
    %v284 = vld [vmem:[#allocation9 + $0x4] sm:$0xf]
    %v285 = vld [vmem:[#allocation9 + $0x8] sm:$0xf]
    %v286 = vld [vmem:[#allocation9 + $0xc] sm:$0xf]
    %v287 = vld [vmem:[#allocation9 + $0x10] sm:$0xf]
    %v288 = vld [vmem:[#allocation9 + $0x14] sm:$0xf]
    %v289 = vld [vmem:[#allocation9 + $0x18] sm:$0xf]
    %v290 = vld [vmem:[#allocation9 + $0x1c] sm:$0xf]
    %v291 = vld [vmem:[#allocation9 + $0x20] sm:$0xf]
    %v292 = vld [vmem:[#allocation9 + $0x24] sm:$0xf]
    %v293 = vld [vmem:[#allocation9 + $0x28] sm:$0xf]
    %v294 = vld [vmem:[#allocation9 + $0x2c] sm:$0xf]
    %v295 = vld [vmem:[#allocation9 + $0x30] sm:$0xf]
    %v296 = vld [vmem:[#allocation9 + $0x34] sm:$0xf]
    %v297 = vld [vmem:[#allocation9 + $0x38] sm:$0xf]
    %v298 = vld [vmem:[#allocation9 + $0x3c] sm:$0xf]
    %v299 = vld [vmem:[#allocation9 + $0x40] sm:$0xf]
    %v300 = vld [vmem:[#allocation9 + $0x44] sm:$0xf]
    %v301 = vld [vmem:[#allocation9 + $0x48] sm:$0xf]
    %v302 = vld [vmem:[#allocation9 + $0x4c] sm:$0xf]
    %v303 = vld [vmem:[#allocation9 + $0x50] sm:$0xf]
    %v304 = vld [vmem:[#allocation9 + $0x54] sm:$0xf]
    %v305 = vld [vmem:[#allocation9 + $0x58] sm:$0xf]
    %v306 = vld [vmem:[#allocation9 + $0x5c] sm:$0xf]
    %v307 = vld [vmem:[#allocation9 + $0x60] sm:$0xf]
    %v308 = vld [vmem:[#allocation9 + $0x64] sm:$0xf]
    %v309 = vld [vmem:[#allocation9 + $0x68] sm:$0xf]
    %v310 = vld [vmem:[#allocation9 + $0x6c] sm:$0xf]
    %v311 = vld [vmem:[#allocation9 + $0x70] sm:$0xf]
    %v312 = vld [vmem:[#allocation9 + $0x74] sm:$0xf]
    %v313 = vld [vmem:[#allocation9 + $0x78] sm:$0xf]
    %v314 = vld [vmem:[#allocation9 + $0x7c] sm:$0xf]
    %v315 = vld [vmem:[%s5] sm:$0x1]
    %v317 = vlaneseq
    %v318 = vshrl.u32 %v317, 7
    %v319 = vsub.s32 0, %v318
    %v320 = vrot.slane %v315, %v319
    %v323 = vunpack.c.l.b16 %v282
    %v324 = vunpack.c.h.b16 %v282
    %v325 = vpack.c.b16 %v323, %v323
    %v326 = vpack.c.b16 %v324, %v324
    %v361 = vunpack.c.l.b16 %v283
    %v362 = vunpack.c.l.b16 %v284
    %v363 = vunpack.c.l.b16 %v285
    %v364 = vunpack.c.l.b16 %v286
    %v365 = vunpack.c.l.b16 %v287
    %v366 = vunpack.c.l.b16 %v288
    %v367 = vunpack.c.l.b16 %v289
    %v368 = vunpack.c.l.b16 %v290
    %v369 = vunpack.c.l.b16 %v291
    %v370 = vunpack.c.l.b16 %v292
    %v371 = vunpack.c.l.b16 %v293
    %v372 = vunpack.c.l.b16 %v294
    %v373 = vunpack.c.l.b16 %v295
    %v374 = vunpack.c.l.b16 %v296
    %v375 = vunpack.c.l.b16 %v297
    %v376 = vunpack.c.l.b16 %v298
    %v377 = vunpack.c.l.b16 %v299
    %v378 = vunpack.c.l.b16 %v300
    %v379 = vunpack.c.l.b16 %v301
    %v380 = vunpack.c.l.b16 %v302
    %v381 = vunpack.c.l.b16 %v303
    %v382 = vunpack.c.l.b16 %v304
    %v383 = vunpack.c.l.b16 %v305
    %v384 = vunpack.c.l.b16 %v306
    %v385 = vunpack.c.l.b16 %v307
    %v386 = vunpack.c.l.b16 %v308
    %v387 = vunpack.c.l.b16 %v309
    %v388 = vunpack.c.l.b16 %v310
    %v389 = vunpack.c.l.b16 %v311
    %v390 = vunpack.c.l.b16 %v312
    %v391 = vunpack.c.l.b16 %v313
    %v392 = vunpack.c.l.b16 %v314
    %v393 = vpack.c.b16 %v362, %v361
    %v394 = vpack.c.b16 %v364, %v363
    %v395 = vpack.c.b16 %v366, %v365
    %v396 = vpack.c.b16 %v368, %v367
    %v397 = vpack.c.b16 %v370, %v369
    %v398 = vpack.c.b16 %v372, %v371
    %v399 = vpack.c.b16 %v374, %v373
    %v400 = vpack.c.b16 %v376, %v375
    %v401 = vpack.c.b16 %v378, %v377
    %v402 = vpack.c.b16 %v380, %v379
    %v403 = vpack.c.b16 %v382, %v381
    %v404 = vpack.c.b16 %v384, %v383
    %v405 = vpack.c.b16 %v386, %v385
    %v406 = vpack.c.b16 %v388, %v387
    %v407 = vpack.c.b16 %v390, %v389
    %v408 = vpack.c.b16 %v392, %v391
    %425 = vmatprep.subr.bf16.mxu0 0
    %426 = vmatpush1.bf16.msra.mxu0 %v400
    %427 = vmatprep.subr.bf16.mxu0 0
    %428 = vmatpush1.bf16.msra.mxu0 %v399
    %429 = vmatprep.subr.bf16.mxu0 0
    %430 = vmatpush1.bf16.msra.mxu0 %v398
    %431 = vmatprep.subr.bf16.mxu0 0
    %432 = vmatpush1.bf16.msra.mxu0 %v397
    %433 = vmatprep.subr.bf16.mxu0 0
    %434 = vmatpush1.bf16.msra.mxu0 %v396
    %435 = vmatprep.subr.bf16.mxu0 0
    %436 = vmatpush1.bf16.msra.mxu0 %v395
    %437 = vmatprep.subr.bf16.mxu0 0
    %438 = vmatpush1.bf16.msra.mxu0 %v394
    %439 = vmatprep.subr.bf16.mxu0 0
    %440 = vmatpush1.bf16.msra.mxu0 %v393
    %441 = vmatprep.subr.bf16.mxu0 0
    %442 = vmatpush2.bf16.msra.mxu0 %v408
    %443 = vmatprep.subr.bf16.mxu0 0
    %444 = vmatpush2.bf16.msra.mxu0 %v407
    %445 = vmatprep.subr.bf16.mxu0 0
    %446 = vmatpush2.bf16.msra.mxu0 %v406
    %447 = vmatprep.subr.bf16.mxu0 0
    %448 = vmatpush2.bf16.msra.mxu0 %v405
    %449 = vmatprep.subr.bf16.mxu0 0
    %450 = vmatpush2.bf16.msra.mxu0 %v404
    %451 = vmatprep.subr.bf16.mxu0 0
    %452 = vmatpush2.bf16.msra.mxu0 %v403
    %453 = vmatprep.subr.bf16.mxu0 0
    %454 = vmatpush2.bf16.msra.mxu0 %v402
    %455 = vmatprep.subr.bf16.mxu0 0
    %456 = vmatpush2.bf16.msra.mxu0 %v401
    %457 = vmatprep.mubr.bf16.mxu0 %v326
    %458 = vmatmul.mubr.bf16.gmra.mxu0 %v325
    %v459 = vpop.f32.mrf.mxu0
    %v460 = vadd.f32 %v320, %v459
    %v461 = vpop.f32.mrf.mxu0
    %v462 = vpop.f32.mrf.mxu0
    %v463 = vpop.f32.mrf.mxu0
    %464 = vdwg.mxu0
    %v465 = vmax.f32 %v460, 0.0
    %v466 = vpack.c.bf16 %v465, %v465
    %v467 = vld [vmem:[#allocation11] sm:$0xf]
    %v468 = vld [vmem:[#allocation11 + $0x4] sm:$0xf]
    %v469 = vld [vmem:[#allocation11 + $0x8] sm:$0xf]
    %v470 = vld [vmem:[#allocation11 + $0xc] sm:$0xf]
    %v471 = vld [vmem:[#allocation11 + $0x10] sm:$0xf]
    %v472 = vld [vmem:[#allocation11 + $0x14] sm:$0xf]
    %v473 = vld [vmem:[#allocation11 + $0x18] sm:$0xf]
    %v474 = vld [vmem:[#allocation11 + $0x1c] sm:$0xf]
    %v475 = vld [vmem:[#allocation11 + $0x20] sm:$0xf]
    %v476 = vld [vmem:[#allocation11 + $0x24] sm:$0xf]
    %v477 = vld [vmem:[#allocation11 + $0x28] sm:$0xf]
    %v478 = vld [vmem:[#allocation11 + $0x2c] sm:$0xf]
    %v479 = vld [vmem:[#allocation11 + $0x30] sm:$0xf]
    %v480 = vld [vmem:[#allocation11 + $0x34] sm:$0xf]
    %v481 = vld [vmem:[#allocation11 + $0x38] sm:$0xf]
    %v482 = vld [vmem:[#allocation11 + $0x3c] sm:$0xf]
    %v483 = vld [vmem:[%s7] sm:$0x1]
    %v485 = vlaneseq
    %v486 = vshrl.u32 %v485, 7
    %v487 = vsub.s32 0, %v486
    %v488 = vrot.slane %v483, %v487
    %v506 = vunpack.c.l.b16 %v467
    %v507 = vunpack.c.l.b16 %v468
    %v508 = vunpack.c.l.b16 %v469
    %v509 = vunpack.c.l.b16 %v470
    %v510 = vunpack.c.l.b16 %v471
    %v511 = vunpack.c.l.b16 %v472
    %v512 = vunpack.c.l.b16 %v473
    %v513 = vunpack.c.l.b16 %v474
    %v514 = vunpack.c.l.b16 %v475
    %v515 = vunpack.c.l.b16 %v476
    %v516 = vunpack.c.l.b16 %v477
    %v517 = vunpack.c.l.b16 %v478
    %v518 = vunpack.c.l.b16 %v479
    %v519 = vunpack.c.l.b16 %v480
    %v520 = vunpack.c.l.b16 %v481
    %v521 = vunpack.c.l.b16 %v482
    %v522 = vpack.c.b16 %v507, %v506
    %v523 = vpack.c.b16 %v509, %v508
    %v524 = vpack.c.b16 %v511, %v510
    %v525 = vpack.c.b16 %v513, %v512
    %v526 = vpack.c.b16 %v515, %v514
    %v527 = vpack.c.b16 %v517, %v516
    %v528 = vpack.c.b16 %v519, %v518
    %v529 = vpack.c.b16 %v521, %v520
    %538 = vmatprep.subr.bf16.mxu0 0
    %539 = vmatpush1.bf16.msra.mxu0 %v529
    %540 = vmatprep.subr.bf16.mxu0 0
    %541 = vmatpush1.bf16.msra.mxu0 %v528
    %542 = vmatprep.subr.bf16.mxu0 0
    %543 = vmatpush1.bf16.msra.mxu0 %v527
    %544 = vmatprep.subr.bf16.mxu0 0
    %545 = vmatpush1.bf16.msra.mxu0 %v526
    %546 = vmatprep.subr.bf16.mxu0 0
    %547 = vmatpush1.bf16.msra.mxu0 %v525
    %548 = vmatprep.subr.bf16.mxu0 0
    %549 = vmatpush1.bf16.msra.mxu0 %v524
    %550 = vmatprep.subr.bf16.mxu0 0
    %551 = vmatpush1.bf16.msra.mxu0 %v523
    %552 = vmatprep.subr.bf16.mxu0 0
    %553 = vmatpush1.bf16.msra.mxu0 %v522
    %554 = vmatprep.subr.bf16.mxu0 0
    %555 = vmatpush2.bf16.msra.mxu0 0
    %556 = vmatprep.subr.bf16.mxu0 0
    %557 = vmatpush2.bf16.msra.mxu0 0
    %558 = vmatprep.subr.bf16.mxu0 0
    %559 = vmatpush2.bf16.msra.mxu0 0
    %560 = vmatprep.subr.bf16.mxu0 0
    %561 = vmatpush2.bf16.msra.mxu0 0
    %562 = vmatprep.subr.bf16.mxu0 0
    %563 = vmatpush2.bf16.msra.mxu0 0
    %564 = vmatprep.subr.bf16.mxu0 0
    %565 = vmatpush2.bf16.msra.mxu0 0
    %566 = vmatprep.subr.bf16.mxu0 0
    %567 = vmatpush2.bf16.msra.mxu0 0
    %568 = vmatprep.subr.bf16.mxu0 0
    %569 = vmatpush2.bf16.msra.mxu0 0
    %570 = vmatprep.mubr.bf16.mxu0 0
    %571 = vmatmul.mubr.bf16.gmra.mxu0 %v466
    %v572 = vpop.f32.mrf.mxu0
    %v573 = vadd.f32 %v488, %v572
    %v574 = vpop.f32.mrf.mxu0
    %v575 = vpop.f32.mrf.mxu0
    %v576 = vpop.f32.mrf.mxu0
    %577 = vdwg.mxu0
    %578 = vst [vmem:[#allocation12] sm:$0xff] %v573
    // Predicated region
    $region54: #{tpu_custom_call.1} parent=1 // pred_check
      _
    $region55: #{tpu_custom_call.1} parent=1 // pred_check_branch
      %580 = sbr.rel (0) target = $region57
    $region56: #{tpu_custom_call.1} parent=1 // pred_region
      %s582 = ssub.s32 128, 128
      %583 = vsyncadd [#allocation5], %s582
      %s585 = sshll.u32 [#allocation12], 4
      %s586 = int_to_ptr.vmem [resolvable:$true] %s585
      %588 = dma.vmem_to_hbm [thread:$0]  %s586, 128, %s8, [#allocation5]
    $region57: #{tpu_custom_call.1} parent=1 // pred_fallthru
      _
    // Predicated region
    $region58: #{tpu_custom_call.1} parent=1 // pred_check
      _
    $region59: #{tpu_custom_call.1} parent=1 // pred_check_branch
      %590 = sbr.rel (0) target = $region61
    $region60: #{tpu_custom_call.1} parent=1 // pred_region
      %591 = dma.done [#allocation5], 128
    $region61: #{tpu_custom_call.1} parent=1 // pred_fallthru
      _
    %592 = vsyncpa [#allocation4], 1
    %593 = vsyncpa [#allocation7], 1
    %594 = vsyncpa [#allocation10], 1
    %595 = vsyncpa [#allocation5], 1

</llo_original>
